<compile_context>
chip_gen: v6e
topology: v6e:2x2x1
jax: 0.10.0
libtpu: 0.0.40
codegen_flags: <defaults>
</compile_context>

<pallas_src>
import functools

import jax
import jax.numpy as jnp
from jax.experimental import pallas as pl
from jax.experimental.pallas import tpu as pltpu


def _rp_loss_kernel(cls_ref, lbl_ref, loss_ref, *, alpha, n):
    x = cls_ref[...].astype(jnp.float32)          # (2, N) logits, lane-dense
    lbl = lbl_ref[...]                            # (1, N) int32

    x0 = x[0:1, :]                                # (1, N)  logit for class 0
    x1 = x[1:2, :]                                # (1, N)  logit for class 1

    is_pos = lbl == 0                             # (1, N) bool
    is_neg = lbl == 1

    # ---- F.cross_entropy(cls_score, label, reduction='none'), C == 2 ----
    # ce = -log softmax(x)[label] = softplus(x_other - x_chosen)
    d = jnp.where(is_pos, x1 - x0, x0 - x1)       # (1, N)
    ce = jnp.maximum(d, 0.0) + jnp.log1p(jnp.exp(-jnp.abs(d)))

    # ---- rp_weight_generate(cls_score, label, alpha) ----
    # softmax is monotone: p0 > p1  <=>  x0 > x1  (no second softmax needed)
    is_fp = jnp.logical_and(is_neg, x0 > x1)
    is_tn = jnp.logical_and(is_neg, x0 < x1)

    n_pos = jnp.sum(is_pos.astype(jnp.float32))
    n_fp = jnp.sum(is_fp.astype(jnp.float32))
    n_tn = jnp.sum(is_tn.astype(jnp.float32))
    n_f = jnp.float32(n)

    w_posfp = n_f * alpha / jnp.maximum(n_pos + n_fp, 1.0)
    w_tn = n_f * (1.0 - alpha) / jnp.maximum(n_tn, 1.0)

    rp_w = jnp.ones_like(ce)
    rp_w = jnp.where(jnp.logical_and(is_pos, n_pos > 0), w_posfp, rp_w)
    rp_w = jnp.where(jnp.logical_and(is_fp, n_fp > 0), w_posfp, rp_w)
    rp_w = jnp.where(jnp.logical_and(is_tn, n_tn > 0), w_tn, rp_w)

    loss_ref[...] = (ce * rp_w).astype(loss_ref.dtype)    # (1, N) lane-dense


def rp_loss(cls_score, label, weight=None, avg_factor=None,
            reduction='mean', reduction_override=None,
            loss_weight=1.0, alpha=0.25):
    """JAX/Pallas equivalent of RPLoss.forward (binary, C == 2)."""
    assert reduction_override in (None, 'none', 'mean', 'sum')
    reduction = reduction_override if reduction_override else reduction

    n, c = cls_score.shape
    assert c == 2, "RPLoss assumes binary classification (C == 2)"
    # TODO(synk): labels outside {0, 1} (e.g. ignore indices) are not handled,
    # matching the binary assumption baked into the original rp_weight_generate.

    cls_t = cls_score.T                            # (2, N), native dtype
    lbl = label.astype(jnp.int32).reshape(1, n)    # (1, N)

    kernel = functools.partial(_rp_loss_kernel, alpha=float(alpha), n=n)

    itemsize = jnp.dtype(cls_score.dtype).itemsize
    cost = pl.CostEstimate(
        flops=int(32 * n),
        transcendentals=int(2 * n),
        bytes_accessed=int(n * c * itemsize + n * 4 + n * 4),
    )

    loss_2d = pl.pallas_call(
        kernel,
        grid=(1,),
        in_specs=[
            pl.BlockSpec((c, n), lambda i: (0, 0)),
            pl.BlockSpec((1, n), lambda i: (0, 0)),
        ],
        out_specs=pl.BlockSpec((1, n), lambda i: (0, 0)),
        out_shape=jax.ShapeDtypeStruct((1, n), jnp.float32),
        compiler_params=pltpu.CompilerParams(
            dimension_semantics=("arbitrary",)),
        cost_estimate=cost,
    )(cls_t, lbl)

    loss_none = loss_2d[0]                         # (N,)

    if weight is not None:
        loss_none = loss_none * weight.astype(jnp.float32)

    total = jnp.sum(loss_none)

    # weight_reduce_loss
    if avg_factor is None:
        if reduction == 'none':
            out = loss_none
        elif reduction == 'sum':
            out = total
        else:  # mean
            out = total / n
    else:
        if reduction == 'mean':
            out = total / avg_factor
        elif reduction == 'none':
            out = loss_none
        else:
            raise ValueError('avg_factor can not be used with reduction="sum"')

    return out * loss_weight


def _reference(cls_score, label, alpha=0.25, loss_weight=1.0):
    """Pure-JAX replica of the PyTorch module (reduction='mean')."""
    cls_score = cls_score.astype(jnp.float32)
    logp = jax.nn.log_softmax(cls_score, axis=1)
    ce = -jnp.take_along_axis(logp, label[:, None].astype(jnp.int32), axis=1)[:, 0]
    p = jax.nn.softmax(cls_score, axis=1)
    is_pos = label == 0
    is_neg = label == 1
    is_fp = is_neg & (p[:, 0] > p[:, 1])
    is_tn = is_neg & (p[:, 0] < p[:, 1])
    n = label.shape[0]
    npos = jnp.sum(is_pos).astype(jnp.float32)
    nfp = jnp.sum(is_fp).astype(jnp.float32)
    ntn = jnp.sum(is_tn).astype(jnp.float32)
    w = jnp.ones((n,), jnp.float32)
    w = jnp.where(is_pos & (npos > 0), n * alpha / jnp.maximum(npos + nfp, 1.0), w)
    w = jnp.where(is_fp & (nfp > 0), n * alpha / jnp.maximum(npos + nfp, 1.0), w)
    w = jnp.where(is_tn & (ntn > 0), n * (1.0 - alpha) / jnp.maximum(ntn, 1.0), w)
    return jnp.mean(ce * w) * loss_weight


if __name__ == "__main__":
    key = jax.random.PRNGKey(0)
    k1, k2 = jax.random.split(key)

    N, C = 128, 2  # proposals x {positive(0), negative(1)} classes
    cls_score = jax.random.normal(k1, (N, C), dtype=jnp.float32)
    # mostly negatives, some positives — typical RPN sampling mix
    label = jax.random.bernoulli(k2, 0.75, (N,)).astype(jnp.int32)

    out = rp_loss(cls_score, label, reduction='mean', loss_weight=1.0, alpha=0.25)
    out = jax.block_until_ready(out)

    ref = _reference(cls_score, label, alpha=0.25, loss_weight=1.0)
    assert jnp.allclose(out, ref, rtol=1e-5, atol=1e-5), (out, ref)

    # Also exercise the native-dtype (bf16) path — kernel widens in-VMEM.
    cls_bf16 = cls_score.astype(jnp.bfloat16)
    out_bf16 = jax.block_until_ready(
        rp_loss(cls_bf16, label, reduction='mean', loss_weight=1.0, alpha=0.25))
    ref_bf16 = _reference(cls_bf16, label, alpha=0.25, loss_weight=1.0)
    assert jnp.allclose(out_bf16, ref_bf16, rtol=1e-2, atol=1e-2), (out_bf16, ref_bf16)

    print("KERNEL_OK")
</pallas_src>

<mosaic_0001>
module attributes {stable_mosaic.version = 11 : i64} {
  func.func @_rp_loss_kernel(%arg0: i32, %arg1: memref<2x128xf32, #tpu.memory_space<vmem>>, %arg2: memref<1x128xi32, #tpu.memory_space<vmem>>, %arg3: memref<1x128xf32, #tpu.memory_space<vmem>>) attributes {dimension_semantics = [#tpu.dimension_semantics<arbitrary>], iteration_bounds = array<i64: 1>, scalar_prefetch = 0 : i64, scratch_operands = 0 : i64, tpu.core_type = #tpu.core_type<tc>, window_params = [{pipeline_mode = #tpu.pipeline_mode<synchronous>, transform_indices = @transform_0, window_bounds = array<i64: 2, 128>}, {pipeline_mode = #tpu.pipeline_mode<synchronous>, transform_indices = @transform_1, window_bounds = array<i64: 1, 128>}, {pipeline_mode = #tpu.pipeline_mode<synchronous>, transform_indices = @transform_2, window_bounds = array<i64: 1, 128>}]} {
    %c0 = arith.constant 0 : index
    %c0_0 = arith.constant 0 : index
    %0 = vector.load %arg1[%c0, %c0_0] : memref<2x128xf32, #tpu.memory_space<vmem>>, vector<2x128xf32>
    %c0_1 = arith.constant 0 : index
    %c0_2 = arith.constant 0 : index
    %1 = vector.load %arg2[%c0_1, %c0_2] : memref<1x128xi32, #tpu.memory_space<vmem>>, vector<1x128xi32>
    %2 = vector.extract_strided_slice %0 {offsets = [0, 0], sizes = [1, 128], strides = [1, 1]} : vector<2x128xf32> to vector<1x128xf32>
    %3 = vector.extract_strided_slice %0 {offsets = [1, 0], sizes = [1, 128], strides = [1, 1]} : vector<2x128xf32> to vector<1x128xf32>
    %c0_i32 = arith.constant 0 : i32
    %4 = vector.broadcast %c0_i32 : i32 to vector<1x128xi32>
    %5 = arith.cmpi eq, %1, %4 : vector<1x128xi32>
    %c1_i32 = arith.constant 1 : i32
    %6 = vector.broadcast %c1_i32 : i32 to vector<1x128xi32>
    %7 = arith.cmpi eq, %1, %6 : vector<1x128xi32>
    %8 = arith.subf %3, %2 : vector<1x128xf32>
    %9 = arith.subf %2, %3 : vector<1x128xf32>
    %10 = arith.select %5, %8, %9 : vector<1x128xi1>, vector<1x128xf32>
    %cst = arith.constant 0.000000e+00 : f32
    %11 = vector.broadcast %cst : f32 to vector<1x128xf32>
    %12 = arith.maximumf %10, %11 : vector<1x128xf32>
    %13 = math.absf %10 : vector<1x128xf32>
    %cst_3 = arith.constant 0.000000e+00 : f32
    %14 = vector.broadcast %cst_3 : f32 to vector<1x128xf32>
    %15 = arith.subf %14, %13 : vector<1x128xf32>
    %16 = math.exp %15 : vector<1x128xf32>
    %17 = math.log1p %16 : vector<1x128xf32>
    %18 = arith.addf %12, %17 : vector<1x128xf32>
    %19 = arith.cmpf ogt, %2, %3 : vector<1x128xf32>
    %20 = arith.andi %7, %19 : vector<1x128xi1>
    %21 = arith.cmpf olt, %2, %3 : vector<1x128xf32>
    %22 = arith.andi %7, %21 : vector<1x128xi1>
    %23 = arith.extui %5 : vector<1x128xi1> to vector<1x128xi32>
    %24 = arith.sitofp %23 : vector<1x128xi32> to vector<1x128xf32>
    %25 = vector.shape_cast %24 : vector<1x128xf32> to vector<1x1x128xf32>
    %cst_4 = arith.constant dense<0.000000e+00> : vector<1xf32>
    %26 = vector.multi_reduction <add>, %25, %cst_4 [1, 2] : vector<1x1x128xf32> to vector<1xf32>
    %27 = vector.shape_cast %26 : vector<1xf32> to vector<1x1x1xf32>
    %28 = vector.extract %27[0, 0, 0] : f32 from vector<1x1x1xf32>
    %29 = arith.extui %20 : vector<1x128xi1> to vector<1x128xi32>
    %30 = arith.sitofp %29 : vector<1x128xi32> to vector<1x128xf32>
    %31 = vector.shape_cast %30 : vector<1x128xf32> to vector<1x1x128xf32>
    %cst_5 = arith.constant dense<0.000000e+00> : vector<1xf32>
    %32 = vector.multi_reduction <add>, %31, %cst_5 [1, 2] : vector<1x1x128xf32> to vector<1xf32>
    %33 = vector.shape_cast %32 : vector<1xf32> to vector<1x1x1xf32>
    %34 = vector.extract %33[0, 0, 0] : f32 from vector<1x1x1xf32>
    %35 = arith.extui %22 : vector<1x128xi1> to vector<1x128xi32>
    %36 = arith.sitofp %35 : vector<1x128xi32> to vector<1x128xf32>
    %37 = vector.shape_cast %36 : vector<1x128xf32> to vector<1x1x128xf32>
    %cst_6 = arith.constant dense<0.000000e+00> : vector<1xf32>
    %38 = vector.multi_reduction <add>, %37, %cst_6 [1, 2] : vector<1x1x128xf32> to vector<1xf32>
    %39 = vector.shape_cast %38 : vector<1xf32> to vector<1x1x1xf32>
    %40 = vector.extract %39[0, 0, 0] : f32 from vector<1x1x1xf32>
    %cst_7 = arith.constant 1.280000e+02 : f32
    %cst_8 = arith.constant 2.500000e-01 : f32
    %41 = arith.mulf %cst_7, %cst_8 : f32
    %42 = arith.addf %28, %34 : f32
    %cst_9 = arith.constant 1.000000e+00 : f32
    %43 = arith.maximumf %42, %cst_9 : f32
    %44 = arith.divf %41, %43 : f32
    %cst_10 = arith.constant 1.280000e+02 : f32
    %cst_11 = arith.constant 7.500000e-01 : f32
    %45 = arith.mulf %cst_10, %cst_11 : f32
    %cst_12 = arith.constant 1.000000e+00 : f32
    %46 = arith.maximumf %40, %cst_12 : f32
    %47 = arith.divf %45, %46 : f32
    %cst_13 = arith.constant 1.000000e+00 : f32
    %48 = vector.broadcast %cst_13 : f32 to vector<1x128xf32>
    %cst_14 = arith.constant 0.000000e+00 : f32
    %49 = arith.cmpf ogt, %28, %cst_14 : f32
    %50 = vector.broadcast %49 : i1 to vector<1x128xi1>
    %51 = arith.andi %5, %50 : vector<1x128xi1>
    %52 = vector.broadcast %44 : f32 to vector<1x128xf32>
    %53 = arith.select %51, %52, %48 : vector<1x128xi1>, vector<1x128xf32>
    %cst_15 = arith.constant 0.000000e+00 : f32
    %54 = arith.cmpf ogt, %34, %cst_15 : f32
    %55 = vector.broadcast %54 : i1 to vector<1x128xi1>
    %56 = arith.andi %20, %55 : vector<1x128xi1>
    %57 = vector.broadcast %44 : f32 to vector<1x128xf32>
    %58 = arith.select %56, %57, %53 : vector<1x128xi1>, vector<1x128xf32>
    %cst_16 = arith.constant 0.000000e+00 : f32
    %59 = arith.cmpf ogt, %40, %cst_16 : f32
    %60 = vector.broadcast %59 : i1 to vector<1x128xi1>
    %61 = arith.andi %22, %60 : vector<1x128xi1>
    %62 = vector.broadcast %47 : f32 to vector<1x128xf32>
    %63 = arith.select %61, %62, %58 : vector<1x128xi1>, vector<1x128xf32>
    %64 = arith.mulf %18, %63 : vector<1x128xf32>
    %c0_17 = arith.constant 0 : index
    %c0_18 = arith.constant 0 : index
    %65 = vector.load %arg3[%c0_17, %c0_18] : memref<1x128xf32, #tpu.memory_space<vmem>>, vector<1x128xf32>
    tpu.vector_store %arg3[%c0_17, %c0_18], %64 {strides = array<i32>} : memref<1x128xf32, #tpu.memory_space<vmem>>, vector<1x128xf32>,
    return
  }
  func.func @transform_0(%arg0: i32) -> (i32, i32) {
    %c0_i32 = arith.constant 0 : i32
    %c0_i32_0 = arith.constant 0 : i32
    %c0_i32_1 = arith.constant 0 : i32
    return %c0_i32, %c0_i32_0 : i32, i32
  }
  func.func @transform_1(%arg0: i32) -> (i32, i32) {
    %c0_i32 = arith.constant 0 : i32
    %c0_i32_0 = arith.constant 0 : i32
    %c0_i32_1 = arith.constant 0 : i32
    return %c0_i32, %c0_i32_0 : i32, i32
  }
  func.func @transform_2(%arg0: i32) -> (i32, i32) {
    %c0_i32 = arith.constant 0 : i32
    %c0_i32_0 = arith.constant 0 : i32
    %c0_i32_1 = arith.constant 0 : i32
    return %c0_i32, %c0_i32_0 : i32, i32
  }
}

</mosaic_0001>

<llo_original>
// kernel: tpu_custom_call.1
$region0: #{tpu_custom_call.1}
  #allocation0 [shape = 'u32[]', space=smem, size = 0x4, offset = 0x4, fixed_abs, tag = 'smem constant byte address 0x4 - core index']
  #allocation1 [shape = 'u32[144,128]{1,0:T(1,128)}', space=vmem, size = 0x12000, scoped, tag = 'internal scratch']
  %s0 = inlined_call_operand.hbm [shape: f32[2,128], index: 0, kind: input, shape index: {}]
  %s1 = inlined_call_operand.vmem [shape: s32[1,128], index: 1, kind: input, shape index: {}]
  %s2 = inlined_call_operand.hbm [shape: f32[1,128], index: 2, kind: output, shape index: {}]
  %s3 = sld [smem:[#allocation0]]
  $region22: #{tpu_custom_call.1} parent=0
    _
  %s5 = ssub.s32 1, %s3
  %s6 = scalar_select 0, %s5, %s3
  $region1: #{tpu_custom_call.1} parent=0
    #allocation2 [shape = 'u8[1024]{0}', space=vmem, size = 0x400, scoped, tag = 'input window, operand 0, single buffered']
    #allocation3 [shape = 's32[1]{0}', space=sflag, size = 0x4, scoped, tag = 'scoped memory for tpu_custom_call.1']
    #allocation4 [shape = 's32[1]{0}', space=sflag, size = 0x4, scoped, tag = 'scoped memory for tpu_custom_call.1']
    #allocation5 [shape = 'u8[512]{0}', space=vmem, size = 0x400, scoped, tag = 'output window, operand 0, single buffered']
    %7 = vsyncpa [#allocation3], 0
    %8 = vsyncpa [#allocation4], 0
    // Predicated region
    $region2: #{tpu_custom_call.1} parent=1 // pred_check
      _
    $region3: #{tpu_custom_call.1} parent=1 // pred_check_branch
      %10 = sbr.rel (0) target = $region5
    $region4: #{tpu_custom_call.1} parent=1 // pred_region
      %s12 = ssub.s32 32, 32
      %13 = vsyncadd [#allocation3], %s12
      %s15 = sshll.u32 [#allocation2], 4
      %s16 = int_to_ptr.vmem [resolvable:$true] %s15
      %18 = dma.hbm_to_vmem [thread:$0]  %s0, 32, %s16, [#allocation3]
    $region5: #{tpu_custom_call.1} parent=1 // pred_fallthru
      _
    // Predicated region
    $region6: #{tpu_custom_call.1} parent=1 // pred_check
      _
    $region7: #{tpu_custom_call.1} parent=1 // pred_check_branch
      %20 = sbr.rel (0) target = $region9
    $region8: #{tpu_custom_call.1} parent=1 // pred_region
      _
    $region9: #{tpu_custom_call.1} parent=1 // pred_fallthru
      _
    // Predicated region
    $region10: #{tpu_custom_call.1} parent=1 // pred_check
      _
    $region11: #{tpu_custom_call.1} parent=1 // pred_check_branch
      %22 = sbr.rel (0) target = $region13
    $region12: #{tpu_custom_call.1} parent=1 // pred_region
      %23 = dma.done [#allocation3], 32
    $region13: #{tpu_custom_call.1} parent=1 // pred_fallthru
      _
    %v24 = vld [vmem:[#allocation2] sm:$0x3]
    %v25 = vld [vmem:[%s1] sm:$0x1]
    %vm26 = vcmp.eq.s32.totalorder %v25, 0
    %vm27 = vcmp.eq.s32.totalorder %v25, 1
    %v29 = vrot.slane %v24, 7
    %v31 = vsub.f32 %v24, %v29
    %v32 = vrot.slane %v24, 1
    %v34 = vsub.f32 %v24, %v32
    %v37 = vunpack.c.l.s4 1966171168
    %v38 = vunpack.c.0.s8 %v37
    %v39 = vlaneseq
    %v40 = vshrl.u32 %v39, 7
    %v41 = vsub.s32 %v38, %v40
    %v42 = vrot.slane %v31, %v41
    %v43 = vcombine.high %v42, %v42
    %v45 = vunpack.c.l.s4 1966171168
    %v46 = vunpack.c.0.s8 %v45
    %v47 = vlaneseq
    %v48 = vshrl.u32 %v47, 7
    %v49 = vsub.s32 %v46, %v48
    %v50 = vrot.slane %v43, %v49
    %v52 = vsel %vm26, %v50, %v34
    %v53 = vmax.f32 %v52, 0.0
    %v54 = vand.u32 2147483647, %v52
    %v55 = vsub.f32 0.0, %v54
    %v56 = vmul.f32 %v55, 1.442695
    %v57 = vpow.pop %v56
    %v58 = vadd.f32 %v57, 1.0
    %v59 = vlog2.pop %v58
    %v60 = vmul.f32 %v59, 0.6931472
    %v61 = vmul.f32 -0.5, %v57
    %v62 = vadd.f32 %v61, 1.0
    %v63 = vmul.f32 %v62, %v57
    %v64 = vand.u32 2147483647, %v57
    %vm65 = vcmp.lt.f32.partialorder %v64, 0.0004427343
    %v66 = vsel %vm65, %v63, %v60
    %v67 = vadd.f32 %v53, %v66
    %vm68 = vcmp.gt.f32.partialorder %v24, %v32
    %vm69 = vmand %vm27, %vm68
    %vm70 = vcmp.lt.f32.partialorder %v24, %v32
    %vm71 = vmand %vm27, %vm70
    %v72 = vsel %vm26, 1, 0
    %v73 = vcvt.s32.f32 %v72
    %vm74 = vcmask 1040384
    %v75 = vsel %vm74, %v73, 0.0
    %76 = vadd.xlane.f32.xlu0 %v75
    %v77 = vpop.xlane.xlu0 %76
    %v78 = vrot.slane %v77, 4
    %v79 = vadd.f32 %v77, %v78
    %v80 = vrot.slane %v79, 2
    %v81 = vadd.f32 %v79, %v80
    %v82 = vrot.slane %v81, 1
    %v83 = vadd.f32 %v81, %v82
    %s84 = vtos %v83
    %v85 = vsel %vm69, 1, 0
    %v86 = vcvt.s32.f32 %v85
    %v87 = vsel %vm74, %v86, 0.0
    %88 = vadd.xlane.f32.xlu0 %v87
    %v89 = vpop.xlane.xlu0 %88
    %v90 = vrot.slane %v89, 4
    %v91 = vadd.f32 %v89, %v90
    %v92 = vrot.slane %v91, 2
    %v93 = vadd.f32 %v91, %v92
    %v94 = vrot.slane %v93, 1
    %v95 = vadd.f32 %v93, %v94
    %s96 = vtos %v95
    %v97 = vsel %vm71, 1, 0
    %v98 = vcvt.s32.f32 %v97
    %v99 = vsel %vm74, %v98, 0.0
    %100 = vadd.xlane.f32.xlu0 %v99
    %v101 = vpop.xlane.xlu0 %100
    %v102 = vrot.slane %v101, 4
    %v103 = vadd.f32 %v101, %v102
    %v104 = vrot.slane %v103, 2
    %v105 = vadd.f32 %v103, %v104
    %v106 = vrot.slane %v105, 1
    %v107 = vadd.f32 %v105, %v106
    %s108 = vtos %v107
    %s109 = sadd.f32 %s84, %s96
    %s110 = smax.f32 %s109, 1.0
    %v111 = vstv %s110
    %v112 = vrcp.pop %v111
    %s113 = vtos %v112
    %s114 = smul.f32 32.0, %s113
    %s115 = smax.f32 %s108, 1.0
    %v116 = vstv %s115
    %v117 = vrcp.pop %v116
    %s118 = vtos %v117
    %s119 = smul.f32 96.0, %s118
    %p120 = scmp.gt.f32.partialorder %s84, 0.0
    %s121 = scalar_select %p120, 1, 0
    %v122 = vstv %s121
    %vm123 = vcmp.eq.s32.totalorder %v122, 1
    %vm124 = vmand %vm26, %vm123
    %v125 = vstv %s114
    %v126 = vsel %vm124, %v125, 1.0
    %p127 = scmp.gt.f32.partialorder %s96, 0.0
    %s128 = scalar_select %p127, 1, 0
    %v129 = vstv %s128
    %vm130 = vcmp.eq.s32.totalorder %v129, 1
    %vm131 = vmand %vm69, %vm130
    %v132 = vsel %vm131, %v125, %v126
    %p133 = scmp.gt.f32.partialorder %s108, 0.0
    %s134 = scalar_select %p133, 1, 0
    %v135 = vstv %s134
    %vm136 = vcmp.eq.s32.totalorder %v135, 1
    %vm137 = vmand %vm71, %vm136
    %v138 = vstv %s119
    %v139 = vsel %vm137, %v138, %v132
    %v140 = vmul.f32 %v67, %v139
    %141 = vst [vmem:[#allocation5] sm:$0x1] %v140
    // Predicated region
    $region14: #{tpu_custom_call.1} parent=1 // pred_check
      _
    $region15: #{tpu_custom_call.1} parent=1 // pred_check_branch
      %143 = sbr.rel (0) target = $region17
    $region16: #{tpu_custom_call.1} parent=1 // pred_region
      %s145 = ssub.s32 16, 16
      %146 = vsyncadd [#allocation4], %s145
      %s148 = sshll.u32 [#allocation5], 4
      %s149 = int_to_ptr.vmem [resolvable:$true] %s148
      %151 = dma.vmem_to_hbm [thread:$0]  %s149, 16, %s2, [#allocation4]
    $region17: #{tpu_custom_call.1} parent=1 // pred_fallthru
      _
    // Predicated region
    $region18: #{tpu_custom_call.1} parent=1 // pred_check
      _
    $region19: #{tpu_custom_call.1} parent=1 // pred_check_branch
      %153 = sbr.rel (0) target = $region21
    $region20: #{tpu_custom_call.1} parent=1 // pred_region
      %154 = dma.done [#allocation4], 16
    $region21: #{tpu_custom_call.1} parent=1 // pred_fallthru
      _
    %155 = vsyncpa [#allocation3], 1
    %156 = vsyncpa [#allocation4], 1

</llo_original>
